<compile_context>
chip_gen: v6e
topology: v6e:2x2x1
jax: 0.10.0
libtpu: 0.0.40
codegen_flags: <defaults>
</compile_context>

<pallas_src>
import functools
import math

import jax
import jax.numpy as jnp
from jax.experimental import pallas as pl
from jax.experimental.pallas import tpu as pltpu


# ------------------------- generation-aware sizing ---------------------------

def _tpu_vmem_capacity_bytes():
    try:
        info = pltpu.get_tpu_info()
        cap = getattr(info, "vmem_capacity_bytes", None)
        if cap:
            return int(cap)
    except Exception:
        pass
    return 64 * 1024 * 1024           # conservative default (v7x per-core VMEM)


_VMEM_CAP = _tpu_vmem_capacity_bytes()
_VMEM_LIMIT = int(max(32 * 1024 * 1024,
                      min(_VMEM_CAP * 0.85, _VMEM_CAP - (4 << 20))))
# Larger tiles amortize the ~0.35us per-grid-step overhead (matters most on
# v7x's faster HBM); 128 MiB parts afford ~8 MiB x-tiles, v7x (64 MiB) ~4 MiB.
_TARGET_TILE_BYTES = (8 << 20) if _VMEM_CAP >= (96 << 20) else (4 << 20)


def _tile_budget(extra_bytes=0):
    """Bytes allowed for one x tile (4x accounting: double-buffered in + out)."""
    return max(256 * 1024,
               min(_TARGET_TILE_BYTES, _VMEM_LIMIT // 6 - extra_bytes))


def _cparams(*semantics):
    return pltpu.CompilerParams(dimension_semantics=tuple(semantics),
                                vmem_limit_bytes=_VMEM_LIMIT)


# ------------------------------ tile choosers --------------------------------

def _row_tile(rows, cols, extra_bytes=0):
    """Second-minor-axis tile: multiple of 8 (or full rows), budget-sized."""
    if rows <= 8:
        return rows
    budget = _tile_budget(extra_bytes)
    tm = budget // max(1, cols * 4)
    tm = max(8, min((tm // 8) * 8, (rows // 8) * 8))
    if tm >= rows and rows >= 16:
        # guarantee >=2 grid steps (megacore sharding + DMA/compute overlap)
        tm = max(8, (((rows + 1) // 2) // 8) * 8)
    return tm


def _lane_tile(L, bytes_per_lane):
    """Last-(lane)-axis tile: full L, or a multiple of 128, budget-sized."""
    budget = _tile_budget()
    t = budget // max(1, bytes_per_lane)
    if t >= L or L <= 128:
        return L
    return max(128, (min(t, L) // 128) * 128)


def _bn_channel_tile(N, C, hw):
    budget = _tile_budget()
    lane = hw if hw < 128 else 128
    cb = budget // max(1, N * lane * 4)
    if cb >= C or C <= 8:
        return C
    return max(8, (cb // 8) * 8)


def _grp_row_tile(R, S, L):
    budget = _tile_budget()
    lane = L if L < 128 else 128
    tr = budget // max(1, S * lane * 4)
    if tr >= R or R <= 8:
        return R
    return max(8, (tr // 8) * 8)


# ------------------------------ Pallas kernels -------------------------------

def _row_norm_kernel(x_ref, g_ref, b_ref, o_ref, *, eps):
    """Resident per-row norm, mean-subtracted (two-pass) variance + affine."""
    x = x_ref[...].astype(jnp.float32)                      # (TM, cols)
    mean = jnp.mean(x, axis=-1, keepdims=True)
    xc = x - mean
    var = jnp.mean(xc * xc, axis=-1, keepdims=True)
    rstd = jax.lax.rsqrt(var + eps)
    g = g_ref[...].astype(jnp.float32)                      # (TM,1) or (1,cols)
    b = b_ref[...].astype(jnp.float32)
    o_ref[...] = (xc * (rstd * g) + b).astype(o_ref.dtype)


def _bn_stats_kernel(x_ref, s_ref, q_ref, *, need_mask, thw, hw):
    """Accumulate per-channel sum / sumsq over (N, hw-tile). x: (N, cb, thw)."""
    @pl.when(pl.program_id(1) == 0)
    def _():
        s_ref[...] = jnp.zeros_like(s_ref)
        q_ref[...] = jnp.zeros_like(q_ref)
    x = x_ref[...].astype(jnp.float32)
    if need_mask:
        lane = jax.lax.broadcasted_iota(jnp.int32, x.shape, x.ndim - 1)
        x = jnp.where(pl.program_id(1) * thw + lane < hw, x, 0.0)
    xs = jnp.sum(x, axis=0)                                 # (cb, thw)  VPU adds
    xq = jnp.sum(x * x, axis=0)                             # (cb, thw)
    s_ref[...] += jnp.sum(xs, axis=-1, keepdims=True)       # one lane-reduce/row
    q_ref[...] += jnp.sum(xq, axis=-1, keepdims=True)


def _bn_apply_kernel(x_ref, s_ref, q_ref, g_ref, b_ref, o_ref, *, eps, inv_count):
    mean = s_ref[...] * inv_count                           # (cb, 1)
    var = jnp.maximum(q_ref[...] * inv_count - mean * mean, 0.0)
    scale = jax.lax.rsqrt(var + eps) * g_ref[...].astype(jnp.float32)
    shift = b_ref[...].astype(jnp.float32) - mean * scale
    x = x_ref[...].astype(jnp.float32)                      # (N, cb, thw)
    o_ref[...] = (x * scale[None, :, :] + shift[None, :, :]).astype(o_ref.dtype)


def _grp_stats_kernel(x_ref, s_ref, q_ref, *, need_mask, thw, hw):
    """Accumulate per-group-row sum / sumsq over (S, hw-tile). x: (tr, S, thw)."""
    @pl.when(pl.program_id(1) == 0)
    def _():
        s_ref[...] = jnp.zeros_like(s_ref)
        q_ref[...] = jnp.zeros_like(q_ref)
    x = x_ref[...].astype(jnp.float32)
    if need_mask:
        lane = jax.lax.broadcasted_iota(jnp.int32, x.shape, x.ndim - 1)
        x = jnp.where(pl.program_id(1) * thw + lane < hw, x, 0.0)
    xs = jnp.sum(x, axis=1)                                 # (tr, thw) sublane-adds
    xq = jnp.sum(x * x, axis=1)
    s_ref[...] += jnp.sum(xs, axis=-1, keepdims=True)       # (tr, 1)
    q_ref[...] += jnp.sum(xq, axis=-1, keepdims=True)


def _grp_apply_kernel(x_ref, s_ref, q_ref, g_ref, b_ref, o_ref, *, eps, inv_count):
    mean = s_ref[...] * inv_count                           # (tr, 1)
    var = jnp.maximum(q_ref[...] * inv_count - mean * mean, 0.0)
    rstd = jax.lax.rsqrt(var + eps)                         # (tr, 1)
    g = g_ref[...].astype(jnp.float32)                      # (tr, S, 1)
    b = b_ref[...].astype(jnp.float32)
    scale = rstd[:, :, None] * g                            # (tr, S, 1)
    shift = b - mean[:, :, None] * scale
    x = x_ref[...].astype(jnp.float32)                      # (tr, S, thw)
    o_ref[...] = (x * scale + shift).astype(o_ref.dtype)


def _pixel_norm_kernel(x_ref, o_ref, *, eps):
    """L2-normalize along channels (sublane axis). Block: (1, C, THW)."""
    x = x_ref[...].astype(jnp.float32)
    ss = jnp.sum(x * x, axis=1, keepdims=True)              # (1, 1, THW)
    inv = jax.lax.rsqrt(jnp.maximum(ss, eps * eps))         # = 1 / max(||x||, eps)
    o_ref[...] = (x * inv).astype(o_ref.dtype)


# ------------------------------ host wrappers --------------------------------

def _row_norm(x2, g, b, eps, *, per_row):
    rows, cols = x2.shape
    extra = 0 if per_row else 16 * cols      # (1,cols) gamma+beta double-buffered
    tm = _row_tile(rows, cols, extra)
    grid = (pl.cdiv(rows, tm),)
    x_spec = pl.BlockSpec((tm, cols), lambda i: (i, 0))
    if per_row:
        p_spec = pl.BlockSpec((tm, 1), lambda i: (i, 0))
    else:
        p_spec = pl.BlockSpec((1, cols), lambda i: (0, 0))
    return pl.pallas_call(
        functools.partial(_row_norm_kernel, eps=eps),
        out_shape=jax.ShapeDtypeStruct((rows, cols), x2.dtype),
        grid=grid,
        in_specs=[x_spec, p_spec, p_spec],
        out_specs=x_spec,
        compiler_params=_cparams("parallel"),
    )(x2, g, b)


def batch_norm2d(x, weight, bias, eps):
    N, C, H, W = x.shape
    hw = H * W
    x3 = x.reshape(N, C, hw)
    cb = _bn_channel_tile(N, C, hw)
    thw = _lane_tile(hw, N * cb * x.dtype.itemsize)
    nc, nk = pl.cdiv(C, cb), pl.cdiv(hw, thw)
    if nc * nk == 1:                          # ensure >=2 grid steps when legal
        if hw >= 256:
            thw = max(128, ((hw // 2) // 128) * 128)
            nk = pl.cdiv(hw, thw)
        elif C >= 16:
            cb = max(8, ((C // 2) // 8) * 8)
            nc = pl.cdiv(C, cb)
    need_mask = (hw % thw) != 0
    x_spec = pl.BlockSpec((N, cb, thw), lambda c, k: (0, c, k))
    stat_spec = pl.BlockSpec((cb, 1), lambda c, k: (c, 0))

    sums, sqs = pl.pallas_call(
        functools.partial(_bn_stats_kernel, need_mask=need_mask, thw=thw, hw=hw),
        out_shape=(jax.ShapeDtypeStruct((C, 1), jnp.float32),
                   jax.ShapeDtypeStruct((C, 1), jnp.float32)),
        grid=(nc, nk),
        in_specs=[x_spec],
        out_specs=(stat_spec, stat_spec),
        compiler_params=_cparams("parallel", "arbitrary"),
    )(x3)

    g2 = weight.reshape(C, 1).astype(jnp.float32)
    b2 = bias.reshape(C, 1).astype(jnp.float32)
    y3 = pl.pallas_call(
        functools.partial(_bn_apply_kernel, eps=eps, inv_count=1.0 / (N * hw)),
        out_shape=jax.ShapeDtypeStruct(x3.shape, x.dtype),
        grid=(nc, nk),
        in_specs=[x_spec, stat_spec, stat_spec, stat_spec, stat_spec],
        out_specs=x_spec,
        compiler_params=_cparams("parallel", "parallel"),
    )(x3, sums, sqs, g2, b2)
    return y3.reshape(N, C, H, W)


def _grouped_norm(x3, g3, b3, eps, inv_count):
    """Streaming per-leading-row norm of x3 (R, S, L); affine g3/b3 (R, S, 1)."""
    R, S, L = x3.shape
    tr = _grp_row_tile(R, S, L)
    thw = _lane_tile(L, tr * S * x3.dtype.itemsize)
    nr, nk = pl.cdiv(R, tr), pl.cdiv(L, thw)
    if nr * nk == 1:                          # ensure >=2 grid steps when legal
        if L >= 256:
            thw = max(128, ((L // 2) // 128) * 128)
            nk = pl.cdiv(L, thw)
        elif R >= 16:
            tr = max(8, ((R // 2) // 8) * 8)
            nr = pl.cdiv(R, tr)
    need_mask = (L % thw) != 0
    x_spec = pl.BlockSpec((tr, S, thw), lambda r, k: (r, 0, k))
    stat_spec = pl.BlockSpec((tr, 1), lambda r, k: (r, 0))
    p_spec = pl.BlockSpec((tr, S, 1), lambda r, k: (r, 0, 0))

    sums, sqs = pl.pallas_call(
        functools.partial(_grp_stats_kernel, need_mask=need_mask, thw=thw, hw=L),
        out_shape=(jax.ShapeDtypeStruct((R, 1), jnp.float32),
                   jax.ShapeDtypeStruct((R, 1), jnp.float32)),
        grid=(nr, nk),
        in_specs=[x_spec],
        out_specs=(stat_spec, stat_spec),
        compiler_params=_cparams("parallel", "arbitrary"),
    )(x3)

    y3 = pl.pallas_call(
        functools.partial(_grp_apply_kernel, eps=eps, inv_count=inv_count),
        out_shape=jax.ShapeDtypeStruct(x3.shape, x3.dtype),
        grid=(nr, nk),
        in_specs=[x_spec, stat_spec, stat_spec, p_spec, p_spec],
        out_specs=x_spec,
        compiler_params=_cparams("parallel", "parallel"),
    )(x3, sums, sqs, g3, b3)
    return y3


def instance_norm2d(x, weight, bias, eps):
    N, C, H, W = x.shape
    hw = H * W
    rows = N * C
    if 8 * hw * 4 <= _tile_budget():
        # resident one-pass path: 2x HBM traffic, two-pass variance
        x2 = x.reshape(rows, hw)
        g2 = jnp.tile(weight, N).reshape(rows, 1)
        b2 = jnp.tile(bias, N).reshape(rows, 1)
        return _row_norm(x2, g2, b2, eps, per_row=True).reshape(N, C, H, W)
    # streaming fallback for very large H*W (group norm with one channel/group)
    x3 = x.reshape(rows, 1, hw)
    g3 = jnp.tile(weight, N).reshape(rows, 1, 1)
    b3 = jnp.tile(bias, N).reshape(rows, 1, 1)
    return _grouped_norm(x3, g3, b3, eps, 1.0 / hw).reshape(N, C, H, W)


def group_norm2d(x, weight, bias, groups, eps):
    N, C, H, W = x.shape
    G = groups
    Cg = C // G
    hw = H * W
    R = N * G
    x3 = x.reshape(R, Cg, hw)
    g3 = jnp.tile(weight.reshape(1, G, Cg), (N, 1, 1)).reshape(R, Cg, 1)
    b3 = jnp.tile(bias.reshape(1, G, Cg), (N, 1, 1)).reshape(R, Cg, 1)
    y3 = _grouped_norm(x3, g3, b3, eps, 1.0 / (Cg * hw))
    return y3.reshape(N, C, H, W)


def layer_norm(x, weight, bias, normalize_shape, eps):
    nd = len(normalize_shape)
    assert x.shape[x.ndim - nd:] == tuple(normalize_shape)
    lead = x.shape[:x.ndim - nd]
    rows = int(math.prod(lead)) if lead else 1
    cols = int(math.prod(normalize_shape))
    x2 = x.reshape(rows, cols)
    g2 = weight.reshape(1, cols)
    b2 = bias.reshape(1, cols)
    y2 = _row_norm(x2, g2, b2, eps, per_row=False)
    return y2.reshape(x.shape)


def pixel_norm(x, eps):
    N, C, H, W = x.shape
    hw = H * W
    x3 = x.reshape(N, C, hw)
    thw = _lane_tile(hw, C * x.dtype.itemsize)
    nk = pl.cdiv(hw, thw)
    if N * nk == 1 and hw >= 256:             # ensure >=2 grid steps when legal
        thw = max(128, ((hw // 2) // 128) * 128)
        nk = pl.cdiv(hw, thw)
    spec = pl.BlockSpec((1, C, thw), lambda n, k: (n, 0, k))
    y3 = pl.pallas_call(
        functools.partial(_pixel_norm_kernel, eps=eps),
        out_shape=jax.ShapeDtypeStruct(x3.shape, x.dtype),
        grid=(N, nk),
        in_specs=[spec],
        out_specs=spec,
        compiler_params=_cparams("parallel", "parallel"),
    )(x3)
    return y3.reshape(N, C, H, W)


# --------------------------------- NormLayer ---------------------------------

class NormLayer:
    """JAX/Pallas port of the PyTorch NormLayer forward pass."""

    def __init__(self, channels, normalize_shape=None, norm_type='bn'):
        norm_type = norm_type.lower()
        self.norm_type = norm_type
        self.channels = channels
        self.eps = 1e-5
        if norm_type in ('bn', 'in', 'gn'):
            # PyTorch default affine init: weight=1, bias=0.
            self.weight = jnp.ones((channels,), jnp.float32)
            self.bias = jnp.zeros((channels,), jnp.float32)
            if norm_type == 'gn':
                self.num_groups = 32
                assert channels % self.num_groups == 0, \
                    'GroupNorm(32, C) requires C divisible by 32'
        elif norm_type == 'layer':
            if isinstance(normalize_shape, int):
                normalize_shape = (normalize_shape,)
            self.normalize_shape = tuple(normalize_shape)
            self.weight = jnp.ones(self.normalize_shape, jnp.float32)
            self.bias = jnp.zeros(self.normalize_shape, jnp.float32)
        elif norm_type == 'pixel':
            self.eps = 1e-12          # F.normalize default eps
        elif norm_type == 'none':
            pass
        else:
            raise AssertionError('Norm type {} not support.'.format(norm_type))

    def __call__(self, x):
        nt = self.norm_type
        if nt == 'none':
            return x
        if nt == 'bn':
            return batch_norm2d(x, self.weight, self.bias, self.eps)
        if nt == 'in':
            return instance_norm2d(x, self.weight, self.bias, self.eps)
        if nt == 'gn':
            return group_norm2d(x, self.weight, self.bias, self.num_groups, self.eps)
        if nt == 'layer':
            return layer_norm(x, self.weight, self.bias, self.normalize_shape, self.eps)
        if nt == 'pixel':
            return pixel_norm(x, self.eps)
        raise AssertionError(nt)


# ------------------------------- pure-JAX refs --------------------------------

def _ref_bn(x, eps=1e-5):
    m = x.mean(axis=(0, 2, 3), keepdims=True)
    v = x.var(axis=(0, 2, 3), keepdims=True)
    return (x - m) / jnp.sqrt(v + eps)


def _ref_in(x, eps=1e-5):
    m = x.mean(axis=(2, 3), keepdims=True)
    v = x.var(axis=(2, 3), keepdims=True)
    return (x - m) / jnp.sqrt(v + eps)


def _ref_gn(x, groups, eps=1e-5):
    N, C, H, W = x.shape
    xr = x.reshape(N, groups, C // groups, H, W)
    m = xr.mean(axis=(2, 3, 4), keepdims=True)
    v = xr.var(axis=(2, 3, 4), keepdims=True)
    return ((xr - m) / jnp.sqrt(v + eps)).reshape(x.shape)


def _ref_layer(x, shape, eps=1e-5):
    axes = tuple(range(x.ndim - len(shape), x.ndim))
    m = x.mean(axis=axes, keepdims=True)
    v = x.var(axis=axes, keepdims=True)
    return (x - m) / jnp.sqrt(v + eps)


def _ref_pixel(x, eps=1e-12):
    n = jnp.sqrt(jnp.sum(x * x, axis=1, keepdims=True))
    return x / jnp.maximum(n, eps)


# ----------------------------------- main -------------------------------------

if __name__ == "__main__":
    key = jax.random.PRNGKey(0)
    x = jax.random.normal(key, (2, 4, 16, 16), jnp.float32)              # NCHW
    x_gn = jax.random.normal(jax.random.PRNGKey(1), (2, 64, 8, 8), jnp.float32)
    # exercises the streaming-bn masked remainder path (24*24 = 576, tile 256)
    x_bn2 = jax.random.normal(jax.random.PRNGKey(2), (2, 8, 24, 24), jnp.float32)

    out_bn = NormLayer(4, norm_type='bn')(x)
    out_bn2 = NormLayer(8, norm_type='bn')(x_bn2)
    out_in = NormLayer(4, norm_type='in')(x)
    out_px = NormLayer(4, norm_type='pixel')(x)
    out_ln = NormLayer(4, normalize_shape=(4, 16, 16), norm_type='layer')(x)
    out_id = NormLayer(4, norm_type='none')(x)
    out_gn = NormLayer(64, norm_type='gn')(x_gn)

    for o in (out_bn, out_bn2, out_in, out_px, out_ln, out_id, out_gn):
        jax.block_until_ready(o)

    assert out_bn.shape == x.shape and out_bn.dtype == x.dtype
    assert jnp.allclose(out_bn, _ref_bn(x), atol=1e-4, rtol=1e-4)
    assert jnp.allclose(out_bn2, _ref_bn(x_bn2), atol=1e-4, rtol=1e-4)
    assert jnp.allclose(out_in, _ref_in(x), atol=1e-4, rtol=1e-4)
    assert jnp.allclose(out_px, _ref_pixel(x), atol=1e-5, rtol=1e-5)
    assert jnp.allclose(out_ln, _ref_layer(x, (4, 16, 16)), atol=1e-4, rtol=1e-4)
    assert jnp.allclose(out_id, x)
    assert jnp.allclose(out_gn, _ref_gn(x_gn, 32), atol=1e-4, rtol=1e-4)

    print("KERNEL_OK")
</pallas_src>

<mosaic_0001>
module attributes {stable_mosaic.version = 11 : i64} {
  func.func @_bn_stats_kernel(%arg0: i32, %arg1: i32, %arg2: memref<2x4x128xf32, #tpu.memory_space<vmem>>, %arg3: memref<4x1xf32, #tpu.memory_space<vmem>>, %arg4: memref<4x1xf32, #tpu.memory_space<vmem>>) attributes {dimension_semantics = [#tpu.dimension_semantics<parallel>, #tpu.dimension_semantics<arbitrary>], iteration_bounds = array<i64: 1, 2>, scalar_prefetch = 0 : i64, scratch_operands = 0 : i64, tpu.core_type = #tpu.core_type<tc>, window_params = [{transform_indices = @transform_0, window_bounds = array<i64: 2, 4, 128>}, {transform_indices = @transform_1, window_bounds = array<i64: 4, 1>}, {transform_indices = @transform_2, window_bounds = array<i64: 4, 1>}]} {
    %c0_i32 = arith.constant 0 : i32
    %0 = arith.cmpi eq, %arg1, %c0_i32 : i32
    %1 = arith.extui %0 : i1 to i32
    %c0_i32_0 = arith.constant 0 : i32
    %2 = arith.cmpi ne, %1, %c0_i32_0 : i32
    scf.if %2 {
      %cst_14 = arith.constant 0.000000e+00 : f32
      %17 = vector.broadcast %cst_14 : f32 to vector<4x1xf32>
      %c0_15 = arith.constant 0 : index
      %c0_16 = arith.constant 0 : index
      %18 = vector.load %arg3[%c0_15, %c0_16] : memref<4x1xf32, #tpu.memory_space<vmem>>, vector<4x1xf32>
      tpu.vector_store %arg3[%c0_15, %c0_16], %17 {strides = array<i32>} : memref<4x1xf32, #tpu.memory_space<vmem>>, vector<4x1xf32>,
      %cst_17 = arith.constant 0.000000e+00 : f32
      %19 = vector.broadcast %cst_17 : f32 to vector<4x1xf32>
      %c0_18 = arith.constant 0 : index
      %c0_19 = arith.constant 0 : index
      %20 = vector.load %arg4[%c0_18, %c0_19] : memref<4x1xf32, #tpu.memory_space<vmem>>, vector<4x1xf32>
      tpu.vector_store %arg4[%c0_18, %c0_19], %19 {strides = array<i32>} : memref<4x1xf32, #tpu.memory_space<vmem>>, vector<4x1xf32>,
    } else {
    }
    %c0 = arith.constant 0 : index
    %c0_1 = arith.constant 0 : index
    %c0_2 = arith.constant 0 : index
    %3 = vector.load %arg2[%c0, %c0_1, %c0_2] : memref<2x4x128xf32, #tpu.memory_space<vmem>>, vector<2x4x128xf32>
    %cst = arith.constant dense<0.000000e+00> : vector<4x128xf32>
    %4 = vector.multi_reduction <add>, %3, %cst [0] : vector<2x4x128xf32> to vector<4x128xf32>
    %5 = arith.mulf %3, %3 : vector<2x4x128xf32>
    %cst_3 = arith.constant dense<0.000000e+00> : vector<4x128xf32>
    %6 = vector.multi_reduction <add>, %5, %cst_3 [0] : vector<2x4x128xf32> to vector<4x128xf32>
    %c0_4 = arith.constant 0 : index
    %c0_5 = arith.constant 0 : index
    %7 = vector.load %arg3[%c0_4, %c0_5] : memref<4x1xf32, #tpu.memory_space<vmem>>, vector<4x1xf32>
    %cst_6 = arith.constant dense<0.000000e+00> : vector<4xf32>
    %8 = vector.multi_reduction <add>, %4, %cst_6 [1] : vector<4x128xf32> to vector<4xf32>
    %9 = vector.shape_cast %8 : vector<4xf32> to vector<4x1xf32>
    %10 = arith.addf %7, %9 : vector<4x1xf32>
    %c0_7 = arith.constant 0 : index
    %c0_8 = arith.constant 0 : index
    %11 = vector.load %arg3[%c0_7, %c0_8] : memref<4x1xf32, #tpu.memory_space<vmem>>, vector<4x1xf32>
    tpu.vector_store %arg3[%c0_7, %c0_8], %10 {strides = array<i32>} : memref<4x1xf32, #tpu.memory_space<vmem>>, vector<4x1xf32>,
    %c0_9 = arith.constant 0 : index
    %c0_10 = arith.constant 0 : index
    %12 = vector.load %arg4[%c0_9, %c0_10] : memref<4x1xf32, #tpu.memory_space<vmem>>, vector<4x1xf32>
    %cst_11 = arith.constant dense<0.000000e+00> : vector<4xf32>
    %13 = vector.multi_reduction <add>, %6, %cst_11 [1] : vector<4x128xf32> to vector<4xf32>
    %14 = vector.shape_cast %13 : vector<4xf32> to vector<4x1xf32>
    %15 = arith.addf %12, %14 : vector<4x1xf32>
    %c0_12 = arith.constant 0 : index
    %c0_13 = arith.constant 0 : index
    %16 = vector.load %arg4[%c0_12, %c0_13] : memref<4x1xf32, #tpu.memory_space<vmem>>, vector<4x1xf32>
    tpu.vector_store %arg4[%c0_12, %c0_13], %15 {strides = array<i32>} : memref<4x1xf32, #tpu.memory_space<vmem>>, vector<4x1xf32>,
    return
  }
  func.func @transform_0(%arg0: i32, %arg1: i32) -> (i32, i32, i32) {
    %c0_i32 = arith.constant 0 : i32
    %c0_i32_0 = arith.constant 0 : i32
    return %c0_i32, %arg0, %arg1 : i32, i32, i32
  }
  func.func @transform_1(%arg0: i32, %arg1: i32) -> (i32, i32) {
    %c0_i32 = arith.constant 0 : i32
    %c0_i32_0 = arith.constant 0 : i32
    return %arg0, %c0_i32 : i32, i32
  }
  func.func @transform_2(%arg0: i32, %arg1: i32) -> (i32, i32) {
    %c0_i32 = arith.constant 0 : i32
    %c0_i32_0 = arith.constant 0 : i32
    return %arg0, %c0_i32 : i32, i32
  }
}

</mosaic_0001>

<llo_original>
// kernel: tpu_custom_call.1
$region0: #{tpu_custom_call.1}
  #allocation0 [shape = 'u32[]', space=smem, size = 0x4, offset = 0x4, fixed_abs, tag = 'smem constant byte address 0x4 - core index']
  #allocation1 [shape = 'u32[144,128]{1,0:T(1,128)}', space=vmem, size = 0x12000, scoped, tag = 'internal scratch']
  %s0 = inlined_call_operand.hbm [shape: f32[2,4,256], index: 0, kind: input, shape index: {}]
  %s1 = inlined_call_operand.vmem [shape: f32[4,1], index: 1, kind: output, shape index: {0}]
  %s2 = inlined_call_operand.vmem [shape: f32[4,1], index: 2, kind: output, shape index: {1}]
  %3 = xla_tuple %s1, %s2
  %s4 = sld [smem:[#allocation0]]
  $region53: #{tpu_custom_call.1} parent=0
    _
  %s6 = ssub.s32 1, %s4
  %s7 = scalar_select 0, %s6, %s4
  $region1: #{tpu_custom_call.1} parent=0
    #allocation2 [shape = 'u8[8192]{0}', space=vmem, size = 0x2000, scoped, tag = 'input window, operand 0']
    #allocation3 [shape = 's32[2]{0}', space=sflag, size = 0x8, scoped, tag = 'scoped memory for tpu_custom_call.1']
    %8 = vsyncpa [#allocation3], 0
    %s9 = scalar_lea.sflag [#allocation3], 1
    %10 = vsyncpa %s9, 0
    loop: start=0, step=1, limit=4
    $region2: #{tpu_custom_call.1} parent=1 // loop_pre_header
      _
    $region3: #{tpu_custom_call.1} parent=1 // loop_header
      %s12 = sphi 0, %s16
      %p13 = scmp.ge.s32.totalorder %s12, 4
      %s19 = sphi 0, %s31
      %s20 = sphi 0, %s27
      %s21 = sphi 0, %s19
      %s22 = sphi 0, %s20
      %s23 = sphi 0, %s21
      %s24 = sphi 0, %s22
      %s36 = sphi 0, %s38
      %s39 = sphi 0, %s36
      %s40 = sphi 0, %s39
      %s56 = sphi 0, %s40
      %s62 = sphi 0, %s64
      %s65 = sphi 0, %s62
      %s66 = sphi 0, %s65
      %s82 = sphi 0, %s66
      %s88 = sphi 0, %s90
      %s91 = sphi 0, %s88
      %s92 = sphi 0, %s91
      %s108 = sphi 0, %s92
    $region4: #{tpu_custom_call.1} parent=1 // loop_header_branch
      %15 = sbr.rel (%p13) target = $region8
    $region5: #{tpu_custom_call.1} parent=1 // loop_body
      %s17 = ssub.s32 %s12, 1
      %s18 = ssub.s32 %s12, 2
      %s25 = sadd.s32 1, %s20
      %p26 = scmp.ge.s32.totalorder %s25, 2
      %s27 = scalar_select %p26, 0, %s25
      %s28 = sadd.s32 1, %s19
      %s29 = scalar_select %p26, %s28, %s19
      %p30 = scmp.ge.s32.totalorder %s29, 1
      %s31 = scalar_select %p30, 0, %s29
      %s32 = ssub.s32 %s19, %s31
      %s33 = ssub.s32 %s20, %s27
      %s34 = sor.u32 %s32, %s33
      %p35 = scmp.eq.s32.totalorder %s34, 0
      %s37 = sadd.s32 %s36, 1
      %s38 = scalar_select %p35, %s36, %s37
      %p41 = pneg %p35
      %p42 = scmp.eq.s32.totalorder %s12, 1
      %p43 = por %p41, %p42
      %p44 = scmp.ne.s32.totalorder %s36, %s39
      %p45 = scmp.eq.s32.totalorder %s12, 0
      %p46 = por %p44, %p45
      %p47 = scmp.ne.s32.totalorder %s36, %s39
      %p48 = scmp.eq.s32.totalorder %s17, 1
      %p49 = por %p47, %p48
      %p50 = scmp.ne.s32.totalorder %s39, %s40
      %p51 = scmp.eq.s32.totalorder %s17, 0
      %p52 = por %p50, %p51
      %p53 = scmp.ne.s32.totalorder %s39, %s40
      %p54 = scmp.eq.s32.totalorder %s18, 1
      %p55 = por %p53, %p54
      %p57 = scmp.ne.s32.totalorder %s40, %s56
      %p58 = scmp.eq.s32.totalorder %s18, 0
      %p59 = por %p57, %p58
      %s60 = ssub.s32 %s19, %s31
      %p61 = scmp.eq.s32.totalorder %s60, 0
      %s63 = sadd.s32 %s62, 1
      %s64 = scalar_select %p61, %s62, %s63
      %p67 = pneg %p61
      %p68 = scmp.eq.s32.totalorder %s12, 1
      %p69 = por %p67, %p68
      %p70 = scmp.ne.s32.totalorder %s62, %s65
      %p71 = scmp.eq.s32.totalorder %s12, 0
      %p72 = por %p70, %p71
      %p73 = scmp.ne.s32.totalorder %s62, %s65
      %p74 = scmp.eq.s32.totalorder %s17, 1
      %p75 = por %p73, %p74
      %p76 = scmp.ne.s32.totalorder %s65, %s66
      %p77 = scmp.eq.s32.totalorder %s17, 0
      %p78 = por %p76, %p77
      %p79 = scmp.ne.s32.totalorder %s65, %s66
      %p80 = scmp.eq.s32.totalorder %s18, 1
      %p81 = por %p79, %p80
      %p83 = scmp.ne.s32.totalorder %s66, %s82
      %p84 = scmp.eq.s32.totalorder %s18, 0
      %p85 = por %p83, %p84
      %s86 = ssub.s32 %s19, %s31
      %p87 = scmp.eq.s32.totalorder %s86, 0
      %s89 = sadd.s32 %s88, 1
      %s90 = scalar_select %p87, %s88, %s89
      %p93 = pneg %p87
      %p94 = scmp.eq.s32.totalorder %s12, 1
      %p95 = por %p93, %p94
      %p96 = scmp.ne.s32.totalorder %s88, %s91
      %p97 = scmp.eq.s32.totalorder %s12, 0
      %p98 = por %p96, %p97
      %p99 = scmp.ne.s32.totalorder %s88, %s91
      %p100 = scmp.eq.s32.totalorder %s17, 1
      %p101 = por %p99, %p100
      %p102 = scmp.ne.s32.totalorder %s91, %s92
      %p103 = scmp.eq.s32.totalorder %s17, 0
      %p104 = por %p102, %p103
      %p105 = scmp.ne.s32.totalorder %s91, %s92
      %p106 = scmp.eq.s32.totalorder %s18, 1
      %p107 = por %p105, %p106
      %p109 = scmp.ne.s32.totalorder %s92, %s108
      %p110 = scmp.eq.s32.totalorder %s18, 0
      %p111 = por %p109, %p110
      %p112 = scmp.le.s32.totalorder 1, %s12
      %p113 = scmp.lt.s32.totalorder %s12, 3
      %p114 = pnand %p112, %p113
      %p115 = pneg %p114
      // Predicated region
      $region9: #{tpu_custom_call.1} parent=5 // pred_check
        _
      $region10: #{tpu_custom_call.1} parent=5 // pred_check_branch
        %117 = sbr.rel (%p114) target = $region12
      $region11: #{tpu_custom_call.1} parent=5 // pred_region
        %s118 = ssub.s32 %s12, 1
      $region12: #{tpu_custom_call.1} parent=5 // pred_fallthru
        _
      %p119 = scmp.lt.s32.totalorder %s12, 2
      // Predicated region
      $region13: #{tpu_custom_call.1} parent=5 // pred_check
        %p120 = pneg %p119
      $region14: #{tpu_custom_call.1} parent=5 // pred_check_branch
        %122 = sbr.rel (%p120) target = $region16
      $region15: #{tpu_custom_call.1} parent=5 // pred_region
        // Predicated region
        $region17: #{tpu_custom_call.1} parent=15 // pred_check
          %p123 = pneg %p46
        $region18: #{tpu_custom_call.1} parent=15 // pred_check_branch
          %125 = sbr.rel (%p123) target = $region20
        $region19: #{tpu_custom_call.1} parent=15 // pred_region
          %s126 = sand.u32 %s36, 1
          %s127 = scalar_lea.sflag [#allocation3], %s126
          %s128 = sand.u32 %s36, 1
          %s129 = smul.addr %s128, 8
          %s130 = scalar_lea.vmem [#allocation2], %s129
          %s132 = ssub.s32 128, 128
          %133 = vsyncadd %s127, %s132
          %s134 = smul.addr %s19, 2
          %s135 = sadd.s32 %s20, %s134
          %s136 = smul.addr %s135, 64
          %s137 = scalar_lea.hbm %s0, %s136
          %s138 = sshll.u32 %s130, 4
          %s139 = int_to_ptr.vmem [resolvable:$true] %s138
          %144 = dma.hbm_to_vmem [thread:$0]  %s137, 128, %s139, %s127, 128, 64, 4
        $region20: #{tpu_custom_call.1} parent=15 // pred_fallthru
          _
      $region16: #{tpu_custom_call.1} parent=5 // pred_fallthru
        _
      %p145 = scmp.le.s32.totalorder 1, %s12
      %p146 = scmp.lt.s32.totalorder %s12, 3
      %p147 = pnand %p145, %p146
      %p148 = pneg %p147
      // Predicated region
      $region21: #{tpu_custom_call.1} parent=5 // pred_check
        _
      $region22: #{tpu_custom_call.1} parent=5 // pred_check_branch
        %150 = sbr.rel (%p147) target = $region24
      $region23: #{tpu_custom_call.1} parent=5 // pred_region
        %s151 = ssub.s32 %s12, 1
        %s152 = sand.u32 %s39, 1
        %s153 = scalar_lea.sflag [#allocation3], %s152
        %s154 = sand.u32 %s39, 1
        %s155 = smul.addr %s154, 8
        %s156 = scalar_lea.vmem [#allocation2], %s155
        // Predicated region
        $region25: #{tpu_custom_call.1} parent=23 // pred_check
          %p157 = pneg %p52
        $region26: #{tpu_custom_call.1} parent=23 // pred_check_branch
          %159 = sbr.rel (%p157) target = $region28
        $region27: #{tpu_custom_call.1} parent=23 // pred_region
          %160 = dma.done %s153, 128
        $region28: #{tpu_custom_call.1} parent=23 // pred_fallthru
          _
        %s161 = sand.u32 %s39, 1
        %s162 = scalar_lea.sflag [#allocation3], %s161
        %s163 = sand.u32 %s39, 1
        %s164 = smul.addr %s163, 8
        %s165 = scalar_lea.vmem [#allocation2], %s164
        %p166 = pneg %p52
        %p167 = pneg %p49
        %p168 = pneg %p78
        %p169 = pneg %p75
        %p170 = scmp.lt.s32.totalorder %s21, 0
        %s171 = scalar_select %p170, %s21, 0
        %s172 = smul.addr %s171, 4
        %s173 = scalar_lea.vmem %s1, %s172
        %p174 = pneg %p104
        %p175 = pneg %p101
        %p176 = scmp.lt.s32.totalorder %s21, 0
        %s177 = scalar_select %p176, %s21, 0
        %s178 = smul.addr %s177, 4
        %s179 = scalar_lea.vmem %s2, %s178
        %p180 = scmp.lt.s32.totalorder %s21, 0
        %s181 = scalar_select %p180, %s21, 0
        %s182 = smul.addr %s181, 4
        %s183 = scalar_lea.vmem %s1, %s182
        %p184 = scmp.lt.s32.totalorder %s21, 0
        %s185 = scalar_select %p184, %s21, 0
        %s186 = smul.addr %s185, 4
        %s187 = scalar_lea.vmem %s2, %s186
        %p188 = scmp.eq.s32.totalorder %s22, 0
        // Predicated region
        $region29: #{tpu_custom_call.1} parent=23 // pred_check
          %p189 = pneg %p188
        $region30: #{tpu_custom_call.1} parent=23 // pred_check_branch
          %191 = sbr.rel (%p189) target = $region32
        $region31: #{tpu_custom_call.1} parent=23 // pred_region
          %vm192 = vcmask 3072
          %193 = vst.msk [vmem:[%s183] sm:$0xf] %vm192, 0.0
          %194 = vst.msk [vmem:[%s187] sm:$0xf] %vm192, 0.0
        $region32: #{tpu_custom_call.1} parent=23 // pred_fallthru
          _
        %v195 = vld [vmem:[%s156] sm:$0xf]
        %v196 = vld [vmem:[%s156 + $0x4] sm:$0xf]
        %vm197 = vcmask 1043456
        %v198 = vsel %vm197, %v195, 0.0
        %v199 = vsel %vm197, %v196, 0.0
        %v200 = vadd.f32 %v198, %v199
        %v201 = vmul.f32 %v195, %v195
        %v202 = vmul.f32 %v196, %v196
        %v203 = vsel %vm197, %v201, 0.0
        %v204 = vsel %vm197, %v202, 0.0
        %v205 = vadd.f32 %v203, %v204
        %v206 = vld [vmem:[%s183] sm:$0xf]
        %v207 = vsel %vm197, %v200, 0.0
        %208 = vadd.xlane.f32.xlu0 %v207
        %v209 = vpop.xlane.xlu0 %208
        %v210 = vadd.f32 %v206, %v209
        %vm211 = vcmask 3072
        %212 = vst.msk [vmem:[%s183] sm:$0xf] %vm211, %v210
        %v213 = vld [vmem:[%s187] sm:$0xf]
        %v214 = vsel %vm197, %v205, 0.0
        %215 = vadd.xlane.f32.xlu0 %v214
        %v216 = vpop.xlane.xlu0 %215
        %v217 = vadd.f32 %v213, %v216
        %218 = vst.msk [vmem:[%s187] sm:$0xf] %vm211, %v217
        %p219 = scmp.lt.s32.totalorder %s21, 0
        %s220 = scalar_select %p219, %s21, 0
        %s221 = smul.addr %s220, 4
        %s222 = scalar_lea.vmem %s1, %s221
        %p223 = scmp.lt.s32.totalorder %s21, 0
        %s224 = scalar_select %p223, %s21, 0
        %s225 = smul.addr %s224, 4
        %s226 = scalar_lea.vmem %s2, %s225
        // Predicated region
        $region33: #{tpu_custom_call.1} parent=23 // pred_check
          %p227 = pneg %p75
        $region34: #{tpu_custom_call.1} parent=23 // pred_check_branch
          %229 = sbr.rel (%p227) target = $region36
        $region35: #{tpu_custom_call.1} parent=23 // pred_region
          _
        $region36: #{tpu_custom_call.1} parent=23 // pred_fallthru
          _
        // Predicated region
        $region37: #{tpu_custom_call.1} parent=23 // pred_check
          %p230 = pneg %p101
        $region38: #{tpu_custom_call.1} parent=23 // pred_check_branch
          %232 = sbr.rel (%p230) target = $region40
        $region39: #{tpu_custom_call.1} parent=23 // pred_region
          _
        $region40: #{tpu_custom_call.1} parent=23 // pred_fallthru
          _
        // Predicated region
        $region41: #{tpu_custom_call.1} parent=23 // pred_check
          %p233 = pneg %p75
        $region42: #{tpu_custom_call.1} parent=23 // pred_check_branch
          %235 = sbr.rel (%p233) target = $region44
        $region43: #{tpu_custom_call.1} parent=23 // pred_region
          %p236 = scmp.lt.s32.totalorder %s21, 0
          %s237 = scalar_select %p236, %s21, 0
          %s238 = smul.addr %s237, 4
          %s239 = scalar_lea.vmem %s1, %s238
        $region44: #{tpu_custom_call.1} parent=23 // pred_fallthru
          _
        // Predicated region
        $region45: #{tpu_custom_call.1} parent=23 // pred_check
          %p240 = pneg %p101
        $region46: #{tpu_custom_call.1} parent=23 // pred_check_branch
          %242 = sbr.rel (%p240) target = $region48
        $region47: #{tpu_custom_call.1} parent=23 // pred_region
          %p243 = scmp.lt.s32.totalorder %s21, 0
          %s244 = scalar_select %p243, %s21, 0
          %s245 = smul.addr %s244, 4
          %s246 = scalar_lea.vmem %s2, %s245
        $region48: #{tpu_custom_call.1} parent=23 // pred_fallthru
          _
      $region24: #{tpu_custom_call.1} parent=5 // pred_fallthru
        _
      %p247 = scmp.le.s32.totalorder 2, %s12
      // Predicated region
      $region49: #{tpu_custom_call.1} parent=5 // pred_check
        %p248 = pneg %p247
      $region50: #{tpu_custom_call.1} parent=5 // pred_check_branch
        %250 = sbr.rel (%p248) target = $region52
      $region51: #{tpu_custom_call.1} parent=5 // pred_region
        %s251 = ssub.s32 %s12, 2
      $region52: #{tpu_custom_call.1} parent=5 // pred_fallthru
        _
    $region6: #{tpu_custom_call.1} parent=1 // loop_footer
      %s16 = sadd.s32 1, %s12
    $region7: #{tpu_custom_call.1} parent=1 // loop_footer_branch
      %11 = sbr.rel target = $region3
    $region8: #{tpu_custom_call.1} parent=1 // loop_exit
      _
    %252 = vsyncpa [#allocation3], 1
    %s253 = scalar_lea.sflag [#allocation3], 1
    %254 = vsyncpa %s253, 1

</llo_original>
